<compile_context>
chip_gen: v7x
topology: tpu7x:2x2x1
jax: 0.10.0
libtpu: 0.0.40
codegen_flags: <defaults>
</compile_context>

<pallas_src>
import jax
import jax.numpy as jnp
from jax.experimental import pallas as pl
from jax.experimental.pallas import tpu as pltpu

_LANE = 128
_SUBLANE = 8


def _round_up(x: int, m: int) -> int:
    return ((x + m - 1) // m) * m


def _vmem_limit_bytes() -> int:
    """Generation-aware VMEM limit: 3/4 of per-core capacity, conservative fallback."""
    try:
        cap = int(pltpu.get_tpu_info().vmem_capacity_bytes)
    except Exception:
        # Conservative: fits v7x's 64 MiB per-TC VMEM; plenty for our <=~20 MiB tiles.
        return 48 * 1024 * 1024
    return min(cap * 3 // 4, 100 * 1024 * 1024)


def _pick_tile(aligned_dim: int, candidates) -> int:
    """Pick the tile that minimizes padded size; prefer the larger tile on ties."""
    best_t, best_p = None, None
    for t in candidates:
        p = _round_up(aligned_dim, t)
        if best_p is None or p < best_p or (p == best_p and t > best_t):
            best_t, best_p = t, p
    return best_t


def _choose_kn_tiles(K: int, N: int):
    K_al = _round_up(K, _LANE)
    N_al = _round_up(N, _LANE)
    # K: take the whole aligned reduction dim when moderate (single K-step fast
    # path, no accumulator read-modify-write); otherwise a big, waste-aware tile.
    tk = K_al if K_al <= 2048 else _pick_tile(K_al, (2048, 1536, 1024, 768, 512))
    # N: exact aligned N for small N (zero padding waste); otherwise 512/256
    # (multiples of 256 keep the v6e/v7x 256x256 MXU passes full).
    tn = N_al if N_al <= 512 else _pick_tile(N_al, (512, 256))
    # Worst-case double-buffered footprint (tm=512, f32): ~19 MiB << 48 MiB limit.
    return tk, tn


def _choose_m_tile(B: int) -> int:
    B_al = _round_up(B, _SUBLANE)
    return B_al if B_al <= 512 else _pick_tile(B_al, (512, 384, 256))


def _linear_kernel_single_k(x_ref, w_ref, b_ref, o_ref):
    # Whole reduction dim in one step: write dot + bias straight to the output
    # tile. No accumulator scratch, no pl.when branches, no acc RMW traffic.
    o_ref[...] = (
        jnp.dot(x_ref[...], w_ref[...], preferred_element_type=jnp.float32)
        + b_ref[...].astype(jnp.float32)
    ).astype(o_ref.dtype)


def _linear_kernel_multi_k(x_ref, w_ref, b_ref, o_ref, acc_ref):
    # x_ref: (tm, tk), w_ref: (tk, tn), b_ref: (1, tn), o_ref: (tm, tn)
    k = pl.program_id(2)

    @pl.when(k == 0)
    def _():
        acc_ref[...] = jnp.zeros_like(acc_ref)

    acc_ref[...] += jnp.dot(x_ref[...], w_ref[...], preferred_element_type=jnp.float32)

    @pl.when(k == pl.num_programs(2) - 1)
    def _():
        o_ref[...] = (acc_ref[...] + b_ref[...].astype(jnp.float32)).astype(o_ref.dtype)


class PallasLinear:
    """out = x @ W.T + b. Weight is transposed to lane-dense (K, N), padded to tile
    multiples and cast to the MXU dtype ONCE at construction; only x is padded per call.
    """

    def __init__(self, weights, bias, *, mxu_dtype=jnp.bfloat16):
        N, K = weights.shape
        if bias.ndim == 1:
            bias = jnp.reshape(bias, (1, N))
        assert bias.shape == (1, N), f"bias shape {bias.shape} != (1, {N})"

        self.N, self.K = N, K
        self.mxu_dtype = mxu_dtype
        self.tk, self.tn = _choose_kn_tiles(K, N)
        self.Kp = _round_up(_round_up(K, _LANE), self.tk)
        self.Np = _round_up(_round_up(N, _LANE), self.tn)
        self.vmem_limit = _vmem_limit_bytes()

        # Lane-dense (K, N) RHS: MXU RHS and (tm, tn) output tile stay lane-dense
        # (unmasked stores, no XLU transpose). Done once, not per call.
        w_kn = weights.T
        if (self.Kp, self.Np) != (K, N):
            w_kn = jnp.pad(w_kn, ((0, self.Kp - K), (0, self.Np - N)))
        if mxu_dtype is not None:
            w_kn = w_kn.astype(mxu_dtype)  # bf16 in HBM: halves the weight stream
        self.w_kn = w_kn

        b = bias.astype(jnp.float32)
        if self.Np != N:
            b = jnp.pad(b, ((0, 0), (0, self.Np - N)))
        self.bias = b

    def __call__(self, x):
        B, K = x.shape
        assert K == self.K, f"in_features mismatch: {K} vs {self.K}"
        out_dtype = x.dtype

        tm, tn, tk = _choose_m_tile(B), self.tn, self.tk
        Mp, Kp, Np = _round_up(_round_up(B, _SUBLANE), tm), self.Kp, self.Np

        # Pad x once per call (K-padding is zeros: contributes nothing to the dot).
        if (Mp, Kp) != (B, K):
            x = jnp.pad(x, ((0, Mp - B), (0, Kp - K)))
        if self.mxu_dtype is not None:
            x = x.astype(self.mxu_dtype)

        n_k = Kp // tk
        cost = pl.CostEstimate(
            flops=2 * Mp * Np * Kp,
            bytes_accessed=(x.size * x.dtype.itemsize
                            + self.w_kn.size * self.w_kn.dtype.itemsize
                            + self.bias.size * 4
                            + Mp * Np * jnp.dtype(out_dtype).itemsize),
            transcendentals=0,
        )

        if n_k == 1:
            # Fast path: 2-D grid, no accumulator scratch.
            grid_spec = pltpu.PrefetchScalarGridSpec(
                num_scalar_prefetch=0,
                grid=(Mp // tm, Np // tn),
                in_specs=[
                    pl.BlockSpec((tm, Kp), lambda i, j: (i, 0)),   # x tile
                    pl.BlockSpec((Kp, tn), lambda i, j: (0, j)),   # W^T tile (K, N)
                    pl.BlockSpec((1, tn), lambda i, j: (0, j)),    # bias tile
                ],
                out_specs=pl.BlockSpec((tm, tn), lambda i, j: (i, j)),
            )
            kernel = _linear_kernel_single_k
            dim_sem = ("parallel", "parallel")
        else:
            grid_spec = pltpu.PrefetchScalarGridSpec(
                num_scalar_prefetch=0,
                grid=(Mp // tm, Np // tn, n_k),
                in_specs=[
                    pl.BlockSpec((tm, tk), lambda i, j, k: (i, k)),   # x tile
                    pl.BlockSpec((tk, tn), lambda i, j, k: (k, j)),   # W^T tile (K, N)
                    pl.BlockSpec((1, tn), lambda i, j, k: (0, j)),    # bias tile
                ],
                out_specs=pl.BlockSpec((tm, tn), lambda i, j, k: (i, j)),
                scratch_shapes=[pltpu.VMEM((tm, tn), jnp.float32)],   # f32 accumulator
            )
            kernel = _linear_kernel_multi_k
            dim_sem = ("parallel", "parallel", "arbitrary")

        # TODO(synk): on v7x, verify the M/N axes actually shard across both
        # TensorCores; if not, switch the M axis to pltpu.CORE_PARALLEL.
        out = pl.pallas_call(
            kernel,
            out_shape=jax.ShapeDtypeStruct((Mp, Np), out_dtype),
            grid_spec=grid_spec,
            compiler_params=pltpu.CompilerParams(
                dimension_semantics=dim_sem,
                vmem_limit_bytes=self.vmem_limit,
            ),
            cost_estimate=cost,
        )(x, self.w_kn, self.bias)

        if (Mp, Np) != (B, self.N):
            out = out[:B, :self.N]
        return out


def linear_forward(x, weights, bias, *, mxu_dtype=jnp.bfloat16):
    """One-off functional form. For repeated calls, build PallasLinear once
    (weight transpose/pad/cast happens a single time) and call it per batch."""
    return PallasLinear(weights, bias, mxu_dtype=mxu_dtype)(x)


if __name__ == "__main__":
    key = jax.random.PRNGKey(0)

    # 1) Small shapes matching the toy module: Linear(out=16, in=32), batch=8.
    #    All-f32 path (mxu_dtype=None) -> strict tolerance; single-K fast path.
    out_f, in_f, batch = 16, 32, 8
    k_x, k_w, k_b, key = jax.random.split(key, 4)
    x = jax.random.normal(k_x, (batch, in_f), dtype=jnp.float32)
    w = jax.random.normal(k_w, (out_f, in_f), dtype=jnp.float32)
    b = jax.random.normal(k_b, (1, out_f), dtype=jnp.float32)
    out = jax.block_until_ready(linear_forward(x, w, b, mxu_dtype=None))
    ref = x @ w.T + b
    assert out.shape == (batch, out_f)
    assert jnp.allclose(out, ref, atol=1e-5, rtol=1e-5), "small f32 case mismatch"

    # 2) Unaligned shapes with K > 2048 to exercise the multi-K-step path
    #    (3-D grid + f32 accumulator) and the waste-aware tile selection.
    B2, K2, N2 = 300, 2304, 272
    k_x2, k_w2, k_b2, key = jax.random.split(key, 4)
    x2 = jax.random.normal(k_x2, (B2, K2), dtype=jnp.float32)
    w2 = jax.random.normal(k_w2, (N2, K2), dtype=jnp.float32)
    b2 = jax.random.normal(k_b2, (1, N2), dtype=jnp.float32)
    out2 = jax.block_until_ready(linear_forward(x2, w2, b2, mxu_dtype=None))
    ref2 = jnp.dot(x2, w2.T, precision=jax.lax.Precision.HIGHEST) + b2
    assert out2.shape == (B2, N2)
    assert jnp.allclose(out2, ref2, atol=5e-2, rtol=5e-3), "multi-K f32 case mismatch"

    # 3) Production config: bf16 MXU operands (weight transposed/padded/cast once
    #    at construction), f32 accumulation, f32 output.
    B3, K3, N3 = 128, 512, 256
    k_x3, k_w3, k_b3, key = jax.random.split(key, 4)
    x3 = jax.random.normal(k_x3, (B3, K3), dtype=jnp.float32)
    w3 = jax.random.normal(k_w3, (N3, K3), dtype=jnp.float32)
    b3 = jax.random.normal(k_b3, (1, N3), dtype=jnp.float32)
    layer = PallasLinear(w3, b3)  # weight prep happens exactly once here
    out3 = jax.block_until_ready(layer(x3))
    ref3 = jnp.dot(x3, w3.T, precision=jax.lax.Precision.HIGHEST) + b3
    assert out3.shape == (B3, N3)
    assert jnp.allclose(out3, ref3, atol=5e-1, rtol=3e-2), "bf16 case mismatch"

    # TODO(synk): backward() / param() (SGD update) are training-time methods of
    # the module and are not part of this forward-pass kernel.
    print("KERNEL_OK")
</pallas_src>

<mosaic_0001>
module attributes {stable_mosaic.version = 11 : i64} {
  func.func @_linear_kernel_single_k(%arg0: i32, %arg1: i32, %arg2: memref<8x128xf32, #tpu.memory_space<vmem>>, %arg3: memref<128x128xf32, #tpu.memory_space<vmem>>, %arg4: memref<1x128xf32, #tpu.memory_space<vmem>>, %arg5: memref<8x128xf32, #tpu.memory_space<vmem>>) attributes {dimension_semantics = [#tpu.dimension_semantics<parallel>, #tpu.dimension_semantics<parallel>], iteration_bounds = array<i64: 1, 1>, scalar_prefetch = 0 : i64, scratch_operands = 0 : i64, tpu.core_type = #tpu.core_type<tc>, window_params = [{transform_indices = @transform_0, window_bounds = array<i64: 8, 128>}, {transform_indices = @transform_1, window_bounds = array<i64: 128, 128>}, {transform_indices = @transform_2, window_bounds = array<i64: 1, 128>}, {transform_indices = @transform_3, window_bounds = array<i64: 8, 128>}]} {
    %c0 = arith.constant 0 : index
    %c0_0 = arith.constant 0 : index
    %0 = vector.load %arg2[%c0, %c0_0] : memref<8x128xf32, #tpu.memory_space<vmem>>, vector<8x128xf32>
    %c0_1 = arith.constant 0 : index
    %c0_2 = arith.constant 0 : index
    %1 = vector.load %arg3[%c0_1, %c0_2] : memref<128x128xf32, #tpu.memory_space<vmem>>, vector<128x128xf32>
    %cst = arith.constant dense<0.000000e+00> : vector<8x128xf32>
    %2 = tpu.matmul %0, %1, %cst {dimension_numbers = #tpu.dot_dimension_numbers<[1], [0], [0], [1], [0, 0, 1, 1], [], []>} : vector<8x128xf32>, vector<128x128xf32>, vector<8x128xf32> -> vector<8x128xf32>
    %c0_3 = arith.constant 0 : index
    %c0_4 = arith.constant 0 : index
    %3 = vector.load %arg4[%c0_3, %c0_4] : memref<1x128xf32, #tpu.memory_space<vmem>>, vector<1x128xf32>
    %4 = vector.broadcast %3 : vector<1x128xf32> to vector<8x128xf32>
    %5 = arith.addf %2, %4 : vector<8x128xf32>
    %c0_5 = arith.constant 0 : index
    %c0_6 = arith.constant 0 : index
    %6 = vector.load %arg5[%c0_5, %c0_6] : memref<8x128xf32, #tpu.memory_space<vmem>>, vector<8x128xf32>
    tpu.vector_store %arg5[%c0_5, %c0_6], %5 {strides = array<i32>} : memref<8x128xf32, #tpu.memory_space<vmem>>, vector<8x128xf32>,
    return
  }
  func.func @transform_0(%arg0: i32, %arg1: i32) -> (i32, i32) {
    %c0_i32 = arith.constant 0 : i32
    %c0_i32_0 = arith.constant 0 : i32
    return %arg0, %c0_i32 : i32, i32
  }
  func.func @transform_1(%arg0: i32, %arg1: i32) -> (i32, i32) {
    %c0_i32 = arith.constant 0 : i32
    %c0_i32_0 = arith.constant 0 : i32
    return %c0_i32, %arg1 : i32, i32
  }
  func.func @transform_2(%arg0: i32, %arg1: i32) -> (i32, i32) {
    %c0_i32 = arith.constant 0 : i32
    %c0_i32_0 = arith.constant 0 : i32
    return %c0_i32, %arg1 : i32, i32
  }
  func.func @transform_3(%arg0: i32, %arg1: i32) -> (i32, i32) {
    %c0_i32 = arith.constant 0 : i32
    return %arg0, %arg1 : i32, i32
  }
}

</mosaic_0001>

<llo_original>
// kernel: tpu_custom_call.1
$region0: #{tpu_custom_call.1}
  #allocation0 [shape = 'u32[]', space=smem, size = 0x4, offset = 0x4, fixed_abs, tag = 'smem constant byte address 0x4 - core index']
  #allocation1 [shape = 'u32[144,128]{1,0:T(1,128)}', space=vmem, size = 0x12000, scoped, tag = 'internal scratch']
  %s0 = inlined_call_operand.hbm [shape: f32[8,128], index: 0, kind: input, shape index: {}]
  %s1 = inlined_call_operand.hbm [shape: f32[128,128], index: 1, kind: input, shape index: {}]
  %s2 = inlined_call_operand.vmem [shape: f32[1,128], index: 2, kind: input, shape index: {}]
  %s3 = inlined_call_operand.hbm [shape: f32[8,128], index: 3, kind: output, shape index: {}]
  %s4 = sld [smem:[#allocation0]]
  $region30: #{tpu_custom_call.1} parent=0
    _
  %s6 = ssub.s32 1, %s4
  %s7 = scalar_select 0, %s6, %s4
  $region1: #{tpu_custom_call.1} parent=0
    #allocation2 [shape = 'u8[4096]{0}', space=vmem, size = 0x1000, scoped, tag = 'input window, operand 0, single buffered']
    #allocation3 [shape = 's32[1]{0}', space=sflag, size = 0x4, scoped, tag = 'scoped memory for tpu_custom_call.1']
    #allocation4 [shape = 's32[1]{0}', space=sflag, size = 0x4, scoped, tag = 'scoped memory for tpu_custom_call.1']
    #allocation5 [shape = 'u8[65536]{0}', space=vmem, size = 0x10000, scoped, tag = 'input window, operand 1, single buffered']
    #allocation6 [shape = 's32[1]{0}', space=sflag, size = 0x4, scoped, tag = 'scoped memory for tpu_custom_call.1']
    #allocation7 [shape = 'u8[4096]{0}', space=vmem, size = 0x1000, scoped, tag = 'output window, operand 0, single buffered']
    %8 = vsyncpa [#allocation3], 0
    %9 = vsyncpa [#allocation6], 0
    %10 = vsyncpa [#allocation4], 0
    // Predicated region
    $region2: #{tpu_custom_call.1} parent=1 // pred_check
      _
    $region3: #{tpu_custom_call.1} parent=1 // pred_check_branch
      %12 = sbr.rel (0) target = $region5
    $region4: #{tpu_custom_call.1} parent=1 // pred_region
      %s14 = ssub.s32 128, 128
      %15 = vsyncadd [#allocation3], %s14
      %s17 = sshll.u32 [#allocation2], 4
      %s18 = int_to_ptr.vmem [resolvable:$true] %s17
      %20 = dma.hbm_to_vmem [thread:$0]  %s0, 128, %s18, [#allocation3]
    $region5: #{tpu_custom_call.1} parent=1 // pred_fallthru
      _
    // Predicated region
    $region6: #{tpu_custom_call.1} parent=1 // pred_check
      _
    $region7: #{tpu_custom_call.1} parent=1 // pred_check_branch
      %22 = sbr.rel (0) target = $region9
    $region8: #{tpu_custom_call.1} parent=1 // pred_region
      %s24 = ssub.s32 2048, 2048
      %25 = vsyncadd [#allocation6], %s24
      %s26 = sshll.u32 [#allocation5], 4
      %s27 = int_to_ptr.vmem [resolvable:$true] %s26
      %32 = dma.hbm_to_vmem [thread:$0]  %s1, 2048, %s27, [#allocation6], 128, 128, 8
    $region9: #{tpu_custom_call.1} parent=1 // pred_fallthru
      _
    // Predicated region
    $region10: #{tpu_custom_call.1} parent=1 // pred_check
      _
    $region11: #{tpu_custom_call.1} parent=1 // pred_check_branch
      %34 = sbr.rel (0) target = $region13
    $region12: #{tpu_custom_call.1} parent=1 // pred_region
      _
    $region13: #{tpu_custom_call.1} parent=1 // pred_fallthru
      _
    // Predicated region
    $region14: #{tpu_custom_call.1} parent=1 // pred_check
      _
    $region15: #{tpu_custom_call.1} parent=1 // pred_check_branch
      %36 = sbr.rel (0) target = $region17
    $region16: #{tpu_custom_call.1} parent=1 // pred_region
      %37 = dma.done [#allocation3], 128
    $region17: #{tpu_custom_call.1} parent=1 // pred_fallthru
      _
    // Predicated region
    $region18: #{tpu_custom_call.1} parent=1 // pred_check
      _
    $region19: #{tpu_custom_call.1} parent=1 // pred_check_branch
      %39 = sbr.rel (0) target = $region21
    $region20: #{tpu_custom_call.1} parent=1 // pred_region
      %40 = dma.done [#allocation6], 2048
    $region21: #{tpu_custom_call.1} parent=1 // pred_fallthru
      _
    %v41 = vld [vmem:[#allocation2] sm:$0xff]
    %v42 = vld [vmem:[#allocation5] sm:$0xff]
    %v43 = vld [vmem:[#allocation5 + $0x8] sm:$0xff]
    %v44 = vld [vmem:[#allocation5 + $0x10] sm:$0xff]
    %v45 = vld [vmem:[#allocation5 + $0x18] sm:$0xff]
    %v46 = vld [vmem:[#allocation5 + $0x20] sm:$0xff]
    %v47 = vld [vmem:[#allocation5 + $0x28] sm:$0xff]
    %v48 = vld [vmem:[#allocation5 + $0x30] sm:$0xff]
    %v49 = vld [vmem:[#allocation5 + $0x38] sm:$0xff]
    %v50 = vld [vmem:[#allocation5 + $0x40] sm:$0xff]
    %v51 = vld [vmem:[#allocation5 + $0x48] sm:$0xff]
    %v52 = vld [vmem:[#allocation5 + $0x50] sm:$0xff]
    %v53 = vld [vmem:[#allocation5 + $0x58] sm:$0xff]
    %v54 = vld [vmem:[#allocation5 + $0x60] sm:$0xff]
    %v55 = vld [vmem:[#allocation5 + $0x68] sm:$0xff]
    %v56 = vld [vmem:[#allocation5 + $0x70] sm:$0xff]
    %v57 = vld [vmem:[#allocation5 + $0x78] sm:$0xff]
    %v58 = vld [vmem:[%s2] sm:$0x1]
    %v60 = vlaneseq
    %v61 = vshrl.u32 %v60, 7
    %v62 = vsub.s32 0, %v61
    %v63 = vrot.slane %v58, %v62
    %65 = vmatprep.subr.mxu0 0.0
    %66 = vmatpush1.msra.mxu0 %v42
    %67 = vmatprep.subr.mxu0 0.0
    %68 = vmatpush1.msra.mxu0 %v43
    %69 = vmatprep.subr.mxu0 0.0
    %70 = vmatpush1.msra.mxu0 %v44
    %71 = vmatprep.subr.mxu0 0.0
    %72 = vmatpush1.msra.mxu0 %v45
    %73 = vmatprep.subr.mxu0 0.0
    %74 = vmatpush1.msra.mxu0 %v46
    %75 = vmatprep.subr.mxu0 0.0
    %76 = vmatpush1.msra.mxu0 %v47
    %77 = vmatprep.subr.mxu0 0.0
    %78 = vmatpush1.msra.mxu0 %v48
    %79 = vmatprep.subr.mxu0 0.0
    %80 = vmatpush1.msra.mxu0 %v49
    %81 = vmatprep.subr.mxu0 0.0
    %82 = vmatpush1.msra.mxu0 %v50
    %83 = vmatprep.subr.mxu0 0.0
    %84 = vmatpush1.msra.mxu0 %v51
    %85 = vmatprep.subr.mxu0 0.0
    %86 = vmatpush1.msra.mxu0 %v52
    %87 = vmatprep.subr.mxu0 0.0
    %88 = vmatpush1.msra.mxu0 %v53
    %89 = vmatprep.subr.mxu0 0.0
    %90 = vmatpush1.msra.mxu0 %v54
    %91 = vmatprep.subr.mxu0 0.0
    %92 = vmatpush1.msra.mxu0 %v55
    %93 = vmatprep.subr.mxu0 0.0
    %94 = vmatpush1.msra.mxu0 %v56
    %95 = vmatprep.subr.mxu0 0.0
    %96 = vmatpush1.msra.mxu0 %v57
    %97 = vmatprep.subr.mxu0 0.0
    %98 = vmatpush1.msra.mxu0 0.0
    %99 = vmatprep.subr.mxu0 0.0
    %100 = vmatpush1.msra.mxu0 0.0
    %101 = vmatprep.subr.mxu0 0.0
    %102 = vmatpush1.msra.mxu0 0.0
    %103 = vmatprep.subr.mxu0 0.0
    %104 = vmatpush1.msra.mxu0 0.0
    %105 = vmatprep.subr.mxu0 0.0
    %106 = vmatpush1.msra.mxu0 0.0
    %107 = vmatprep.subr.mxu0 0.0
    %108 = vmatpush1.msra.mxu0 0.0
    %109 = vmatprep.subr.mxu0 0.0
    %110 = vmatpush1.msra.mxu0 0.0
    %111 = vmatprep.subr.mxu0 0.0
    %112 = vmatpush1.msra.mxu0 0.0
    %113 = vmatprep.subr.mxu0 0.0
    %114 = vmatpush1.msra.mxu0 0.0
    %115 = vmatprep.subr.mxu0 0.0
    %116 = vmatpush1.msra.mxu0 0.0
    %117 = vmatprep.subr.mxu0 0.0
    %118 = vmatpush1.msra.mxu0 0.0
    %119 = vmatprep.subr.mxu0 0.0
    %120 = vmatpush1.msra.mxu0 0.0
    %121 = vmatprep.subr.mxu0 0.0
    %122 = vmatpush1.msra.mxu0 0.0
    %123 = vmatprep.subr.mxu0 0.0
    %124 = vmatpush1.msra.mxu0 0.0
    %125 = vmatprep.subr.mxu0 0.0
    %126 = vmatpush1.msra.mxu0 0.0
    %127 = vmatprep.subr.mxu0 0.0
    %128 = vmatpush1.msra.mxu0 0.0
    %129 = vmatprep.mubr.f32.mxu0 0.0
    %130 = vmatmul.mubr.f32.gmra.mrb[0].mxu0 %v41
    %v131 = vpop.f32.mrb[0].mxu0
    %v132 = vadd.f32 %v63, %v131
    %v133 = vpop.f32.mrb[0].mxu0
    %134 = vdwg.mxu0
    %135 = vst [vmem:[#allocation7] sm:$0xff] %v132
    // Predicated region
    $region22: #{tpu_custom_call.1} parent=1 // pred_check
      _
    $region23: #{tpu_custom_call.1} parent=1 // pred_check_branch
      %137 = sbr.rel (0) target = $region25
    $region24: #{tpu_custom_call.1} parent=1 // pred_region
      %s139 = ssub.s32 128, 128
      %140 = vsyncadd [#allocation4], %s139
      %s142 = sshll.u32 [#allocation7], 4
      %s143 = int_to_ptr.vmem [resolvable:$true] %s142
      %145 = dma.vmem_to_hbm [thread:$0]  %s143, 128, %s3, [#allocation4]
    $region25: #{tpu_custom_call.1} parent=1 // pred_fallthru
      _
    // Predicated region
    $region26: #{tpu_custom_call.1} parent=1 // pred_check
      _
    $region27: #{tpu_custom_call.1} parent=1 // pred_check_branch
      %147 = sbr.rel (0) target = $region29
    $region28: #{tpu_custom_call.1} parent=1 // pred_region
      %148 = dma.done [#allocation4], 128
    $region29: #{tpu_custom_call.1} parent=1 // pred_fallthru
      _
    %149 = vsyncpa [#allocation3], 1
    %150 = vsyncpa [#allocation6], 1
    %151 = vsyncpa [#allocation4], 1

</llo_original>
